<compile_context>
chip_gen: v7x
topology: tpu7x:2x2x1
jax: 0.10.0
libtpu: 0.0.40
codegen_flags: <defaults>
</compile_context>

<pallas_src>
import functools

import jax
import jax.numpy as jnp
from jax.experimental import pallas as pl
from jax.experimental.pallas import tpu as pltpu

HIDDEN = 128     # fc1 output width (matches the PyTorch module)
LANE = 128       # TPU lane width
SUBLANE = 8      # TPU sublane width


def _round_up(x, m):
    return ((x + m - 1) // m) * m


def _dqn_kernel(x_ref, w1_ref, b1_ref, w2_ref, b2_ref, out_ref):
    """One batch tile: two MXU matmuls + bias + ReLU; narrow (n_actions) store."""
    # fc1 + ReLU.  K is one sublane (8); accumulate in f32, bias/ReLU in f32
    # (v5e has no bf16 VPU, so elementwise stays f32 on every generation).
    h = jnp.dot(x_ref[...], w1_ref[...],
                preferred_element_type=jnp.float32)          # (tb, 128) f32
    h = jnp.maximum(h + b1_ref[...], 0.0)

    # fc2.  RHS is lane-dense (128 wide, zero-padded cols); cast right before
    # the dot only when the weight dtype differs (bf16 path).
    y = jnp.dot(h.astype(w2_ref.dtype), w2_ref[...],
                preferred_element_type=jnp.float32)          # (tb, 128) f32
    y = y + b2_ref[...]

    # Store only the valid action columns (masked narrow store -> tiny writeback).
    n_out = out_ref.shape[-1]
    out_ref[...] = y[:, :n_out].astype(out_ref.dtype)


def init_params(key, input_dims, n_actions, hidden=HIDDEN):
    """PyTorch-style U[-1/sqrt(fan_in), 1/sqrt(fan_in)] init, (in, out) layout."""
    k1, k2, k3, k4 = jax.random.split(key, 4)
    bound1 = 1.0 / jnp.sqrt(jnp.float32(input_dims))
    bound2 = 1.0 / jnp.sqrt(jnp.float32(hidden))
    w1 = jax.random.uniform(k1, (input_dims, hidden), jnp.float32, -bound1, bound1)
    b1 = jax.random.uniform(k2, (hidden,), jnp.float32, -bound1, bound1)
    w2 = jax.random.uniform(k3, (hidden, n_actions), jnp.float32, -bound2, bound2)
    b2 = jax.random.uniform(k4, (n_actions,), jnp.float32, -bound2, bound2)
    return w1, b1, w2, b2


def pad_params(w1, b1, w2, b2, *, compute_dtype=jnp.bfloat16):
    """One-time padding: K -> one sublane (8); w2/b2 cols lane-dense for the MXU.

    bf16 is the default compute dtype (v6e/v7x-native, v5e-safe); pass
    compute_dtype=jnp.float32 for a full-precision path.
    """
    d_in, hidden = w1.shape
    _, n_actions = w2.shape
    d_pad = _round_up(d_in, SUBLANE)      # K padded to 8, NOT 128 (perf fix)
    n_pad = _round_up(n_actions, LANE)    # lane-dense MXU RHS; store stays narrow

    w1p = jnp.zeros((d_pad, hidden), compute_dtype).at[:d_in, :].set(
        w1.astype(compute_dtype))
    b1p = b1.reshape(1, hidden).astype(jnp.float32)
    w2p = jnp.zeros((hidden, n_pad), compute_dtype).at[:, :n_actions].set(
        w2.astype(compute_dtype))
    b2p = jnp.zeros((1, n_pad), jnp.float32).at[:, :n_actions].set(
        b2.reshape(1, n_actions).astype(jnp.float32))
    return w1p, b1p, w2p, b2p


@functools.partial(jax.jit, static_argnames=("n_actions", "block_batch"))
def linear_dqn_forward(state, w1p, b1p, w2p, b2p, *, n_actions, block_batch=2048):
    """state: (B, input_dims) f32 -> actions: (B, n_actions) f32."""
    B, d_in = state.shape
    d_pad, hidden = w1p.shape
    n_pad = w2p.shape[1]

    # Balanced batch tiling: tb is always a multiple of 8 (sublane rule); the
    # grid stays at 1 step for B <= block_batch, and splits into >=2 balanced
    # "parallel" tiles (v7x megacore) only for large batches.
    b_rounded = _round_up(B, SUBLANE)
    tb_cap = _round_up(max(block_batch, SUBLANE), SUBLANE)
    n_tiles = -(-b_rounded // tb_cap)                 # ceil div (static ints)
    tb = _round_up(-(-b_rounded // n_tiles), SUBLANE)
    b_pad = tb * n_tiles

    # Tiny lane/sublane pad of the activation stream (K: d_in -> 8).
    x = state.astype(w1p.dtype)
    if b_pad != B or d_pad != d_in:
        x = jnp.pad(x, ((0, b_pad - B), (0, d_pad - d_in)))

    out = pl.pallas_call(
        _dqn_kernel,
        out_shape=jax.ShapeDtypeStruct((b_pad, n_actions), jnp.float32),
        grid=(n_tiles,),
        in_specs=[
            pl.BlockSpec((tb, d_pad), lambda i: (i, 0)),       # activation stream
            pl.BlockSpec((d_pad, hidden), lambda i: (0, 0)),   # w1: VMEM-resident
            pl.BlockSpec((1, hidden), lambda i: (0, 0)),       # b1: VMEM-resident
            pl.BlockSpec((hidden, n_pad), lambda i: (0, 0)),   # w2: VMEM-resident
            pl.BlockSpec((1, n_pad), lambda i: (0, 0)),        # b2: VMEM-resident
        ],
        out_specs=pl.BlockSpec((tb, n_actions), lambda i: (i, 0)),  # narrow store
        compiler_params=pltpu.CompilerParams(
            dimension_semantics=("parallel",)),
    )(x, w1p, b1p, w2p, b2p)

    # Only batch padding (if any) remains to slice; no lane slice needed anymore.
    return out[:B]


def _reference(state, w1, b1, w2, b2):
    return jnp.maximum(state @ w1 + b1, 0.0) @ w2 + b2


if __name__ == "__main__":
    # CartPole-like config: observation dim 4, 2 actions.
    input_dims = 4
    n_actions = 2

    key = jax.random.PRNGKey(0)
    pkey, xkey1, xkey2, xkey3 = jax.random.split(key, 4)
    w1, b1, w2, b2 = init_params(pkey, input_dims, n_actions)
    ref_fn = lambda s: _reference(s, w1, b1, w2, b2)

    # --- f32 path, single tile (B=8) --------------------------------------
    params_f32 = pad_params(w1, b1, w2, b2, compute_dtype=jnp.float32)
    state_small = jax.random.normal(xkey1, (8, input_dims), jnp.float32)
    actions = linear_dqn_forward(state_small, *params_f32, n_actions=n_actions)
    jax.block_until_ready(actions)
    assert actions.shape == (8, n_actions)
    assert jnp.allclose(actions, ref_fn(state_small), atol=1e-5, rtol=1e-5)

    # --- f32 path, ragged batch not a multiple of 8 (B=30 -> tb=32) -------
    state_rag = jax.random.normal(xkey2, (30, input_dims), jnp.float32)
    actions_rag = linear_dqn_forward(state_rag, *params_f32, n_actions=n_actions)
    jax.block_until_ready(actions_rag)
    assert actions_rag.shape == (30, n_actions)
    assert jnp.allclose(actions_rag, ref_fn(state_rag), atol=1e-5, rtol=1e-5)

    # --- f32 path, multi-tile grid (B=200, block_batch=64 -> 4 x tb=56) ---
    state_big = jax.random.normal(xkey3, (200, input_dims), jnp.float32)
    actions_big = linear_dqn_forward(state_big, *params_f32,
                                     n_actions=n_actions, block_batch=64)
    jax.block_until_ready(actions_big)
    assert actions_big.shape == (200, n_actions)
    assert jnp.allclose(actions_big, ref_fn(state_big), atol=1e-5, rtol=1e-5)

    # --- default bf16 weights/activations, f32 accumulation (v6e/v7x) -----
    params_bf16 = pad_params(w1, b1, w2, b2)   # bf16 by default now
    actions_bf16 = linear_dqn_forward(state_small, *params_bf16,
                                      n_actions=n_actions)
    jax.block_until_ready(actions_bf16)
    assert actions_bf16.shape == (8, n_actions)
    assert jnp.allclose(actions_bf16, ref_fn(state_small), atol=5e-2, rtol=5e-2)

    print("KERNEL_OK")
</pallas_src>

<mosaic_0001>
module attributes {stable_mosaic.version = 11 : i64} {
  func.func @_dqn_kernel(%arg0: i32, %arg1: memref<8x8xf32, #tpu.memory_space<vmem>>, %arg2: memref<8x128xf32, #tpu.memory_space<vmem>>, %arg3: memref<1x128xf32, #tpu.memory_space<vmem>>, %arg4: memref<128x128xf32, #tpu.memory_space<vmem>>, %arg5: memref<1x128xf32, #tpu.memory_space<vmem>>, %arg6: memref<8x2xf32, #tpu.memory_space<vmem>>) attributes {dimension_semantics = [#tpu.dimension_semantics<parallel>], iteration_bounds = array<i64: 1>, scalar_prefetch = 0 : i64, scratch_operands = 0 : i64, tpu.core_type = #tpu.core_type<tc>, window_params = [{transform_indices = @transform_0, window_bounds = array<i64: 8, 8>}, {pipeline_mode = #tpu.pipeline_mode<synchronous>, transform_indices = @transform_1, window_bounds = array<i64: 8, 128>}, {pipeline_mode = #tpu.pipeline_mode<synchronous>, transform_indices = @transform_2, window_bounds = array<i64: 1, 128>}, {pipeline_mode = #tpu.pipeline_mode<synchronous>, transform_indices = @transform_3, window_bounds = array<i64: 128, 128>}, {pipeline_mode = #tpu.pipeline_mode<synchronous>, transform_indices = @transform_4, window_bounds = array<i64: 1, 128>}, {transform_indices = @transform_5, window_bounds = array<i64: 8, 2>}]} {
    %c0 = arith.constant 0 : index
    %c0_0 = arith.constant 0 : index
    %0 = vector.load %arg1[%c0, %c0_0] : memref<8x8xf32, #tpu.memory_space<vmem>>, vector<8x8xf32>
    %c0_1 = arith.constant 0 : index
    %c0_2 = arith.constant 0 : index
    %1 = vector.load %arg2[%c0_1, %c0_2] : memref<8x128xf32, #tpu.memory_space<vmem>>, vector<8x128xf32>
    %cst = arith.constant dense<0.000000e+00> : vector<8x128xf32>
    %2 = tpu.matmul %0, %1, %cst {dimension_numbers = #tpu.dot_dimension_numbers<[1], [0], [0], [1], [0, 0, 1, 1], [], []>} : vector<8x8xf32>, vector<8x128xf32>, vector<8x128xf32> -> vector<8x128xf32>
    %c0_3 = arith.constant 0 : index
    %c0_4 = arith.constant 0 : index
    %3 = vector.load %arg3[%c0_3, %c0_4] : memref<1x128xf32, #tpu.memory_space<vmem>>, vector<1x128xf32>
    %4 = vector.broadcast %3 : vector<1x128xf32> to vector<8x128xf32>
    %5 = arith.addf %2, %4 : vector<8x128xf32>
    %cst_5 = arith.constant 0.000000e+00 : f32
    %6 = vector.broadcast %cst_5 : f32 to vector<8x128xf32>
    %7 = arith.maximumf %5, %6 : vector<8x128xf32>
    %c0_6 = arith.constant 0 : index
    %c0_7 = arith.constant 0 : index
    %8 = vector.load %arg4[%c0_6, %c0_7] : memref<128x128xf32, #tpu.memory_space<vmem>>, vector<128x128xf32>
    %cst_8 = arith.constant dense<0.000000e+00> : vector<8x128xf32>
    %9 = tpu.matmul %7, %8, %cst_8 {dimension_numbers = #tpu.dot_dimension_numbers<[1], [0], [0], [1], [0, 0, 1, 1], [], []>} : vector<8x128xf32>, vector<128x128xf32>, vector<8x128xf32> -> vector<8x128xf32>
    %c0_9 = arith.constant 0 : index
    %c0_10 = arith.constant 0 : index
    %10 = vector.load %arg5[%c0_9, %c0_10] : memref<1x128xf32, #tpu.memory_space<vmem>>, vector<1x128xf32>
    %11 = vector.broadcast %10 : vector<1x128xf32> to vector<8x128xf32>
    %12 = arith.addf %9, %11 : vector<8x128xf32>
    %13 = vector.extract_strided_slice %12 {offsets = [0, 0], sizes = [8, 2], strides = [1, 1]} : vector<8x128xf32> to vector<8x2xf32>
    %c0_11 = arith.constant 0 : index
    %c0_12 = arith.constant 0 : index
    %14 = vector.load %arg6[%c0_11, %c0_12] : memref<8x2xf32, #tpu.memory_space<vmem>>, vector<8x2xf32>
    tpu.vector_store %arg6[%c0_11, %c0_12], %13 {strides = array<i32>} : memref<8x2xf32, #tpu.memory_space<vmem>>, vector<8x2xf32>,
    return
  }
  func.func @transform_0(%arg0: i32) -> (i32, i32) {
    %c0_i32 = arith.constant 0 : i32
    %c0_i32_0 = arith.constant 0 : i32
    return %arg0, %c0_i32 : i32, i32
  }
  func.func @transform_1(%arg0: i32) -> (i32, i32) {
    %c0_i32 = arith.constant 0 : i32
    %c0_i32_0 = arith.constant 0 : i32
    %c0_i32_1 = arith.constant 0 : i32
    return %c0_i32, %c0_i32_0 : i32, i32
  }
  func.func @transform_2(%arg0: i32) -> (i32, i32) {
    %c0_i32 = arith.constant 0 : i32
    %c0_i32_0 = arith.constant 0 : i32
    %c0_i32_1 = arith.constant 0 : i32
    return %c0_i32, %c0_i32_0 : i32, i32
  }
  func.func @transform_3(%arg0: i32) -> (i32, i32) {
    %c0_i32 = arith.constant 0 : i32
    %c0_i32_0 = arith.constant 0 : i32
    %c0_i32_1 = arith.constant 0 : i32
    return %c0_i32, %c0_i32_0 : i32, i32
  }
  func.func @transform_4(%arg0: i32) -> (i32, i32) {
    %c0_i32 = arith.constant 0 : i32
    %c0_i32_0 = arith.constant 0 : i32
    %c0_i32_1 = arith.constant 0 : i32
    return %c0_i32, %c0_i32_0 : i32, i32
  }
  func.func @transform_5(%arg0: i32) -> (i32, i32) {
    %c0_i32 = arith.constant 0 : i32
    %c0_i32_0 = arith.constant 0 : i32
    return %arg0, %c0_i32 : i32, i32
  }
}

</mosaic_0001>

<llo_original>
// kernel: linear_dqn_forward.1
$region0: #{linear_dqn_forward.1}
  #allocation0 [shape = 'u32[]', space=smem, size = 0x4, offset = 0x4, fixed_abs, tag = 'smem constant byte address 0x4 - core index']
  #allocation1 [shape = 'u32[144,128]{1,0:T(1,128)}', space=vmem, size = 0x12000, scoped, tag = 'internal scratch']
  %s0 = inlined_call_operand.vmem [shape: f32[8,8], index: 0, kind: input, shape index: {}]
  %s1 = inlined_call_operand.vmem [shape: f32[8,128], index: 1, kind: input, shape index: {}]
  %s2 = inlined_call_operand.vmem [shape: f32[1,128], index: 2, kind: input, shape index: {}]
  %s3 = inlined_call_operand.hbm [shape: f32[128,128], index: 3, kind: input, shape index: {}]
  %s4 = inlined_call_operand.vmem [shape: f32[1,128], index: 4, kind: input, shape index: {}]
  %s5 = inlined_call_operand.vmem [shape: f32[8,2], index: 5, kind: output, shape index: {}]
  %s6 = sld [smem:[#allocation0]]
  $region34: #{linear_dqn_forward.1} parent=0
    _
  %s8 = ssub.s32 1, %s6
  %s9 = scalar_select 0, %s8, %s6
  $region1: #{linear_dqn_forward.1} parent=0
    #allocation2 [shape = 'u8[65536]{0}', space=vmem, size = 0x10000, scoped, tag = 'input window, operand 3, single buffered']
    #allocation3 [shape = 's32[1]{0}', space=sflag, size = 0x4, scoped, tag = 'scoped memory for linear_dqn_forward.1']
    %10 = vsyncpa [#allocation3], 0
    // Predicated region
    $region2: #{linear_dqn_forward.1} parent=1 // pred_check
      _
    $region3: #{linear_dqn_forward.1} parent=1 // pred_check_branch
      %12 = sbr.rel (0) target = $region5
    $region4: #{linear_dqn_forward.1} parent=1 // pred_region
      _
    $region5: #{linear_dqn_forward.1} parent=1 // pred_fallthru
      _
    // Predicated region
    $region6: #{linear_dqn_forward.1} parent=1 // pred_check
      _
    $region7: #{linear_dqn_forward.1} parent=1 // pred_check_branch
      %14 = sbr.rel (0) target = $region9
    $region8: #{linear_dqn_forward.1} parent=1 // pred_region
      _
    $region9: #{linear_dqn_forward.1} parent=1 // pred_fallthru
      _
    // Predicated region
    $region10: #{linear_dqn_forward.1} parent=1 // pred_check
      _
    $region11: #{linear_dqn_forward.1} parent=1 // pred_check_branch
      %16 = sbr.rel (0) target = $region13
    $region12: #{linear_dqn_forward.1} parent=1 // pred_region
      _
    $region13: #{linear_dqn_forward.1} parent=1 // pred_fallthru
      _
    // Predicated region
    $region14: #{linear_dqn_forward.1} parent=1 // pred_check
      _
    $region15: #{linear_dqn_forward.1} parent=1 // pred_check_branch
      %18 = sbr.rel (0) target = $region17
    $region16: #{linear_dqn_forward.1} parent=1 // pred_region
      %s20 = ssub.s32 2048, 2048
      %21 = vsyncadd [#allocation3], %s20
      %s22 = sshll.u32 [#allocation2], 4
      %s23 = int_to_ptr.vmem [resolvable:$true] %s22
      %28 = dma.hbm_to_vmem [thread:$0]  %s3, 2048, %s23, [#allocation3], 128, 128, 8
    $region17: #{linear_dqn_forward.1} parent=1 // pred_fallthru
      _
    // Predicated region
    $region18: #{linear_dqn_forward.1} parent=1 // pred_check
      _
    $region19: #{linear_dqn_forward.1} parent=1 // pred_check_branch
      %30 = sbr.rel (0) target = $region21
    $region20: #{linear_dqn_forward.1} parent=1 // pred_region
      _
    $region21: #{linear_dqn_forward.1} parent=1 // pred_fallthru
      _
    // Predicated region
    $region22: #{linear_dqn_forward.1} parent=1 // pred_check
      _
    $region23: #{linear_dqn_forward.1} parent=1 // pred_check_branch
      %32 = sbr.rel (0) target = $region25
    $region24: #{linear_dqn_forward.1} parent=1 // pred_region
      %33 = dma.done [#allocation3], 2048
    $region25: #{linear_dqn_forward.1} parent=1 // pred_fallthru
      _
    %v34 = vld [vmem:[%s0] sm:$0xff]
    %v35 = vld [vmem:[%s1] sm:$0xff]
    %v36 = vld [vmem:[%s2] sm:$0x1]
    %v38 = vlaneseq
    %v39 = vshrl.u32 %v38, 7
    %v40 = vsub.s32 0, %v39
    %v41 = vrot.slane %v36, %v40
    %vm43 = vcmask 64512
    %v45 = vsel %vm43, %v34, 0
    %47 = vmatprep.subr.mxu0 0.0
    %48 = vmatpush1.msra.mxu0 %v35
    %49 = vmatprep.subr.mxu0 0.0
    %50 = vmatpush1.msra.mxu0 0.0
    %51 = vmatprep.subr.mxu0 0.0
    %52 = vmatpush1.msra.mxu0 0.0
    %53 = vmatprep.subr.mxu0 0.0
    %54 = vmatpush1.msra.mxu0 0.0
    %55 = vmatprep.subr.mxu0 0.0
    %56 = vmatpush1.msra.mxu0 0.0
    %57 = vmatprep.subr.mxu0 0.0
    %58 = vmatpush1.msra.mxu0 0.0
    %59 = vmatprep.subr.mxu0 0.0
    %60 = vmatpush1.msra.mxu0 0.0
    %61 = vmatprep.subr.mxu0 0.0
    %62 = vmatpush1.msra.mxu0 0.0
    %63 = vmatprep.subr.mxu0 0.0
    %64 = vmatpush1.msra.mxu0 0.0
    %65 = vmatprep.subr.mxu0 0.0
    %66 = vmatpush1.msra.mxu0 0.0
    %67 = vmatprep.subr.mxu0 0.0
    %68 = vmatpush1.msra.mxu0 0.0
    %69 = vmatprep.subr.mxu0 0.0
    %70 = vmatpush1.msra.mxu0 0.0
    %71 = vmatprep.subr.mxu0 0.0
    %72 = vmatpush1.msra.mxu0 0.0
    %73 = vmatprep.subr.mxu0 0.0
    %74 = vmatpush1.msra.mxu0 0.0
    %75 = vmatprep.subr.mxu0 0.0
    %76 = vmatpush1.msra.mxu0 0.0
    %77 = vmatprep.subr.mxu0 0.0
    %78 = vmatpush1.msra.mxu0 0.0
    %79 = vmatprep.subr.mxu0 0.0
    %80 = vmatpush1.msra.mxu0 0.0
    %81 = vmatprep.subr.mxu0 0.0
    %82 = vmatpush1.msra.mxu0 0.0
    %83 = vmatprep.subr.mxu0 0.0
    %84 = vmatpush1.msra.mxu0 0.0
    %85 = vmatprep.subr.mxu0 0.0
    %86 = vmatpush1.msra.mxu0 0.0
    %87 = vmatprep.subr.mxu0 0.0
    %88 = vmatpush1.msra.mxu0 0.0
    %89 = vmatprep.subr.mxu0 0.0
    %90 = vmatpush1.msra.mxu0 0.0
    %91 = vmatprep.subr.mxu0 0.0
    %92 = vmatpush1.msra.mxu0 0.0
    %93 = vmatprep.subr.mxu0 0.0
    %94 = vmatpush1.msra.mxu0 0.0
    %95 = vmatprep.subr.mxu0 0.0
    %96 = vmatpush1.msra.mxu0 0.0
    %97 = vmatprep.subr.mxu0 0.0
    %98 = vmatpush1.msra.mxu0 0.0
    %99 = vmatprep.subr.mxu0 0.0
    %100 = vmatpush1.msra.mxu0 0.0
    %101 = vmatprep.subr.mxu0 0.0
    %102 = vmatpush1.msra.mxu0 0.0
    %103 = vmatprep.subr.mxu0 0.0
    %104 = vmatpush1.msra.mxu0 0.0
    %105 = vmatprep.subr.mxu0 0.0
    %106 = vmatpush1.msra.mxu0 0.0
    %107 = vmatprep.subr.mxu0 0.0
    %108 = vmatpush1.msra.mxu0 0.0
    %109 = vmatprep.subr.mxu0 0.0
    %110 = vmatpush1.msra.mxu0 0.0
    %111 = vmatprep.mubr.f32.mxu0 0.0
    %112 = vmatmul.mubr.f32.gmra.mrb[0].mxu0 %v45
    %v113 = vpop.f32.mrb[0].mxu0
    %v114 = vadd.f32 %v41, %v113
    %v115 = vpop.f32.mrb[0].mxu0
    %116 = vdwg.mxu0
    %v117 = vmax.f32 %v114, 0.0
    %v118 = vld [vmem:[#allocation2] sm:$0xff]
    %v119 = vld [vmem:[#allocation2 + $0x8] sm:$0xff]
    %v120 = vld [vmem:[#allocation2 + $0x10] sm:$0xff]
    %v121 = vld [vmem:[#allocation2 + $0x18] sm:$0xff]
    %v122 = vld [vmem:[#allocation2 + $0x20] sm:$0xff]
    %v123 = vld [vmem:[#allocation2 + $0x28] sm:$0xff]
    %v124 = vld [vmem:[#allocation2 + $0x30] sm:$0xff]
    %v125 = vld [vmem:[#allocation2 + $0x38] sm:$0xff]
    %v126 = vld [vmem:[#allocation2 + $0x40] sm:$0xff]
    %v127 = vld [vmem:[#allocation2 + $0x48] sm:$0xff]
    %v128 = vld [vmem:[#allocation2 + $0x50] sm:$0xff]
    %v129 = vld [vmem:[#allocation2 + $0x58] sm:$0xff]
    %v130 = vld [vmem:[#allocation2 + $0x60] sm:$0xff]
    %v131 = vld [vmem:[#allocation2 + $0x68] sm:$0xff]
    %v132 = vld [vmem:[#allocation2 + $0x70] sm:$0xff]
    %v133 = vld [vmem:[#allocation2 + $0x78] sm:$0xff]
    %v134 = vld [vmem:[%s4] sm:$0x1]
    %v136 = vlaneseq
    %v137 = vshrl.u32 %v136, 7
    %v138 = vsub.s32 0, %v137
    %v139 = vrot.slane %v134, %v138
    %141 = vmatprep.subr.mxu0 0.0
    %142 = vmatpush1.msra.mxu0 %v118
    %143 = vmatprep.subr.mxu0 0.0
    %144 = vmatpush1.msra.mxu0 %v119
    %145 = vmatprep.subr.mxu0 0.0
    %146 = vmatpush1.msra.mxu0 %v120
    %147 = vmatprep.subr.mxu0 0.0
    %148 = vmatpush1.msra.mxu0 %v121
    %149 = vmatprep.subr.mxu0 0.0
    %150 = vmatpush1.msra.mxu0 %v122
    %151 = vmatprep.subr.mxu0 0.0
    %152 = vmatpush1.msra.mxu0 %v123
    %153 = vmatprep.subr.mxu0 0.0
    %154 = vmatpush1.msra.mxu0 %v124
    %155 = vmatprep.subr.mxu0 0.0
    %156 = vmatpush1.msra.mxu0 %v125
    %157 = vmatprep.subr.mxu0 0.0
    %158 = vmatpush1.msra.mxu0 %v126
    %159 = vmatprep.subr.mxu0 0.0
    %160 = vmatpush1.msra.mxu0 %v127
    %161 = vmatprep.subr.mxu0 0.0
    %162 = vmatpush1.msra.mxu0 %v128
    %163 = vmatprep.subr.mxu0 0.0
    %164 = vmatpush1.msra.mxu0 %v129
    %165 = vmatprep.subr.mxu0 0.0
    %166 = vmatpush1.msra.mxu0 %v130
    %167 = vmatprep.subr.mxu0 0.0
    %168 = vmatpush1.msra.mxu0 %v131
    %169 = vmatprep.subr.mxu0 0.0
    %170 = vmatpush1.msra.mxu0 %v132
    %171 = vmatprep.subr.mxu0 0.0
    %172 = vmatpush1.msra.mxu0 %v133
    %173 = vmatprep.subr.mxu0 0.0
    %174 = vmatpush1.msra.mxu0 0.0
    %175 = vmatprep.subr.mxu0 0.0
    %176 = vmatpush1.msra.mxu0 0.0
    %177 = vmatprep.subr.mxu0 0.0
    %178 = vmatpush1.msra.mxu0 0.0
    %179 = vmatprep.subr.mxu0 0.0
    %180 = vmatpush1.msra.mxu0 0.0
    %181 = vmatprep.subr.mxu0 0.0
    %182 = vmatpush1.msra.mxu0 0.0
    %183 = vmatprep.subr.mxu0 0.0
    %184 = vmatpush1.msra.mxu0 0.0
    %185 = vmatprep.subr.mxu0 0.0
    %186 = vmatpush1.msra.mxu0 0.0
    %187 = vmatprep.subr.mxu0 0.0
    %188 = vmatpush1.msra.mxu0 0.0
    %189 = vmatprep.subr.mxu0 0.0
    %190 = vmatpush1.msra.mxu0 0.0
    %191 = vmatprep.subr.mxu0 0.0
    %192 = vmatpush1.msra.mxu0 0.0
    %193 = vmatprep.subr.mxu0 0.0
    %194 = vmatpush1.msra.mxu0 0.0
    %195 = vmatprep.subr.mxu0 0.0
    %196 = vmatpush1.msra.mxu0 0.0
    %197 = vmatprep.subr.mxu0 0.0
    %198 = vmatpush1.msra.mxu0 0.0
    %199 = vmatprep.subr.mxu0 0.0
    %200 = vmatpush1.msra.mxu0 0.0
    %201 = vmatprep.subr.mxu0 0.0
    %202 = vmatpush1.msra.mxu0 0.0
    %203 = vmatprep.subr.mxu0 0.0
    %204 = vmatpush1.msra.mxu0 0.0
    %205 = vmatprep.mubr.f32.mxu0 0.0
    %206 = vmatmul.mubr.f32.gmra.mrb[0].mxu0 %v117
    %v207 = vpop.f32.mrb[0].mxu0
    %v208 = vadd.f32 %v139, %v207
    %v209 = vpop.f32.mrb[0].mxu0
    %210 = vdwg.mxu0
    %vm211 = vcmask 15360
    %212 = vst.msk [vmem:[%s5] sm:$0xff] %vm211, %v208
    // Predicated region
    $region26: #{linear_dqn_forward.1} parent=1 // pred_check
      _
    $region27: #{linear_dqn_forward.1} parent=1 // pred_check_branch
      %214 = sbr.rel (0) target = $region29
    $region28: #{linear_dqn_forward.1} parent=1 // pred_region
      _
    $region29: #{linear_dqn_forward.1} parent=1 // pred_fallthru
      _
    // Predicated region
    $region30: #{linear_dqn_forward.1} parent=1 // pred_check
      _
    $region31: #{linear_dqn_forward.1} parent=1 // pred_check_branch
      %216 = sbr.rel (0) target = $region33
    $region32: #{linear_dqn_forward.1} parent=1 // pred_region
      _
    $region33: #{linear_dqn_forward.1} parent=1 // pred_fallthru
      _
    %217 = vsyncpa [#allocation3], 1

</llo_original>
